<compile_context>
chip_gen: v7x
topology: tpu7x:2x2x1
jax: 0.10.0
libtpu: 0.0.40
codegen_flags: <defaults>
</compile_context>

<pallas_src>
import numpy as np
import jax
import jax.numpy as jnp
from jax.experimental import pallas as pl
from jax.experimental.pallas import tpu as pltpu

LEAKY_SLOPE = 0.01            # nn.LeakyReLU default negative_slope
BN_EPS = 1e-5                 # nn.BatchNorm1d default eps


def _round_up(x, m):
    return -(-x // m) * m


def _padded_block_bytes(shape, itemsize=4):
    """VMEM bytes for ONE buffer of `shape`, accounting for (8,128) tile padding."""
    shape = tuple(int(d) for d in shape)
    if len(shape) < 2:
        shape = (1,) * (2 - len(shape)) + shape
    lead = 1
    for d in shape[:-2]:
        lead *= d
    return lead * _round_up(shape[-2], 8) * _round_up(shape[-1], 128) * itemsize


def _vmem_capacity_bytes():
    try:
        return int(pltpu.get_tpu_info().vmem_capacity_bytes)
    except Exception:
        return 64 * 1024 * 1024   # conservative fallback (v7x per-core VMEM)


def _make_kernel(nh, nd, scale):
    """Fused LastLayer kernel on a lane-packed slab of nblk instances.

    Refs (per grid step):
      x_ref    : (B, nh)            activations; nblk instances packed along lanes
      w_ref    : (nh, nh + nd)      [block-diag base weight | block-diag head weight]
      seg_ref  : (nd, nd)           block-diagonal softmax-segment membership (0/1)
      rows_ref : (5, max(nh, nd))   gamma, beta, head bias, onehot mask, 1/|segment|
      out_ref  : (B, nd)            lane-dense output slab
    """

    def kernel(x_ref, w_ref, seg_ref, rows_ref, out_ref):
        x = x_ref[...]                                                        # (B, nh)

        # ---- base Linear(H, H); bias dropped (cancels in training-mode BatchNorm) ----
        h = jnp.dot(x, w_ref[:, 0:nh], preferred_element_type=jnp.float32)    # (B, nh)

        # ---- BatchNorm1d: training-mode batch statistics, biased variance.
        #      Each lane column is one (instance, feature) pair, so a plain per-column
        #      reduction over the B rows gives correct per-instance statistics. ----
        mean = jnp.mean(h, axis=0, keepdims=True)
        diff = h - mean
        var = jnp.mean(diff * diff, axis=0, keepdims=True)
        gamma = rows_ref[0:1, 0:nh]
        beta = rows_ref[1:2, 0:nh]
        h = diff * jax.lax.rsqrt(var + BN_EPS) * gamma + beta

        # ---- LeakyReLU ----
        h = jnp.where(h >= 0.0, h, LEAKY_SLOPE * h)

        # ---- all heads fused into one block-diagonal matmul ----
        bias = rows_ref[2:3, 0:nd]
        y = jnp.dot(h, w_ref[:, nh:nh + nd],
                    preferred_element_type=jnp.float32) + bias                # (B, nd)

        # ---- lane-dense epilogue: per-segment softmax + tanh, no slicing/concat ----
        mask = rows_ref[3:4, 0:nd] > 0.5          # onehot columns
        invsz = rows_ref[4:5, 0:nd]               # 1/|segment| on onehot columns, else 0
        seg = seg_ref[...]

        # Per-segment MEAN as the softmax stabiliser (softmax is shift-invariant per
        # segment; centering guarantees the per-segment exp-sum is >= 1 -> no underflow).
        c = jnp.dot(y, seg, preferred_element_type=jnp.float32) * invsz
        e = jnp.exp(jnp.where(mask, y - c, 0.0))                  # scalar cols -> exp(0)=1
        den = jnp.dot(e, seg, preferred_element_type=jnp.float32)
        den = jnp.where(mask, den, 1.0)
        inv = pl.reciprocal(den, approx=True)                     # EUP vrcp (free slot)
        inv = inv * (2.0 - den * inv)                             # one Newton step -> ~f32

        # scalar head: tanh then data_normalize_scale (lastlayer_func='tanh')
        out_ref[...] = jnp.where(mask, e * inv, jnp.tanh(y) * scale)

    return kernel


def make_last_layer(params, onehot_slices, hidden_dim, output_dim, scale, nblk=8):
    """Build a jitted LastLayer forward.

    params = (wb, gamma, beta, wh, bh)  -- base-layer bias intentionally omitted
    (it cancels exactly through training-mode BatchNorm).

    The returned function accepts x of shape (B, H) (one forward call) or (N, B, H)
    (N independent forward calls).  nblk instances are packed per grid step along the
    lane axis; choose nblk >= 128 / output_dim so stores are unmasked.
    """
    wb, gamma, beta, wh, bh = params
    H, Dout = int(hidden_dim), int(output_dim)
    onehot_slices = tuple(onehot_slices)
    nh, nd = nblk * H, nblk * Dout
    pw = max(nh, nd)

    # ---------- packed constants, built ONCE per parameter set ----------
    eye = jnp.eye(nblk, dtype=jnp.float32)
    w_pack = jnp.concatenate(
        [jnp.kron(eye, wb.astype(jnp.float32)),        # (nh, nh)  block-diag base weight
         jnp.kron(eye, wh.astype(jnp.float32))],       # (nh, nd)  block-diag head weight
        axis=1)                                        # (nh, nh + nd)

    seg1 = np.zeros((Dout, Dout), np.float32)
    mask1 = np.zeros((Dout,), np.float32)
    invsz1 = np.zeros((Dout,), np.float32)
    for (s, e) in onehot_slices:
        seg1[s:e, s:e] = 1.0
        mask1[s:e] = 1.0
        invsz1[s:e] = 1.0 / (e - s)
    seg = jnp.asarray(np.kron(np.eye(nblk, dtype=np.float32), seg1))   # (nd, nd)

    def _tiled_row(v, width):
        v = np.asarray(jax.device_get(jnp.ravel(v)), np.float32)
        v = np.tile(v, nblk)
        assert v.shape[0] == width
        return np.pad(v, (0, pw - width))

    rows = jnp.asarray(np.stack([
        _tiled_row(gamma, nh),                       # row 0: gamma (tiled)
        _tiled_row(beta, nh),                        # row 1: beta  (tiled)
        _tiled_row(bh, nd),                          # row 2: head bias (tiled)
        np.pad(np.tile(mask1, nblk), (0, pw - nd)),  # row 3: onehot mask
        np.pad(np.tile(invsz1, nblk), (0, pw - nd)),  # row 4: 1/|segment|
    ]))                                              # (5, pw)

    kernel = _make_kernel(nh, nd, float(scale))
    vmem_cap = _vmem_capacity_bytes()
    vmem_limit = int(vmem_cap * 3 // 4)              # leave double-buffer / spill headroom

    def forward(x):
        squeeze = (x.ndim == 2)
        if squeeze:
            x = x[None]
        N, B, H_ = x.shape
        assert H_ == H, (H_, H)

        nc = pl.cdiv(N, nblk)
        n_pad = nc * nblk - N
        if n_pad:
            x = jnp.concatenate([x, jnp.zeros((n_pad, B, H), x.dtype)], axis=0)

        # lane-pack: (nc, nblk, B, H) -> (nc, B, nblk*H)   (wrapper-side layout plumbing)
        xp = (x.astype(jnp.float32)
              .reshape(nc, nblk, B, H).transpose(0, 2, 1, 3).reshape(nc, B, nh))

        # (8,128)-padded, double-buffered VMEM estimate + guard (generation-aware cap)
        est = 2 * (_padded_block_bytes((B, nh)) + _padded_block_bytes((B, nd))
                   + _padded_block_bytes((nh, nh + nd)) + _padded_block_bytes((nd, nd))
                   + _padded_block_bytes((5, pw))) \
            + 8 * _padded_block_bytes((B, max(nh, nd)))     # live intermediates / spill slack
        if est > vmem_limit:
            raise ValueError(
                f"estimated VMEM {est} B exceeds limit {vmem_limit} B "
                f"(chip capacity {vmem_cap} B); reduce nblk or batch size B")

        out = pl.pallas_call(
            kernel,
            out_shape=jax.ShapeDtypeStruct((nc, B, nd), jnp.float32),
            grid=(nc,),
            in_specs=[
                pl.BlockSpec((None, B, nh), lambda i: (i, 0, 0)),   # per-step activations
                pl.BlockSpec((nh, nh + nd), lambda i: (0, 0)),      # resident packed weights
                pl.BlockSpec((nd, nd), lambda i: (0, 0)),           # resident segment matrix
                pl.BlockSpec((5, pw), lambda i: (0, 0)),            # resident packed rows
            ],
            out_specs=pl.BlockSpec((None, B, nd), lambda i: (i, 0, 0)),
            compiler_params=pltpu.CompilerParams(
                dimension_semantics=("parallel",),   # v7x: shard grid steps over 2 TCs
                vmem_limit_bytes=vmem_limit),
        )(xp, w_pack, seg, rows)

        # un-pack lanes: (nc, B, nblk*Dout) -> (N, B, Dout)
        out = (out.reshape(nc, B, nblk, Dout).transpose(0, 2, 1, 3)
               .reshape(nc * nblk, B, Dout))[:N]
        return out[0] if squeeze else out

    return jax.jit(forward)


def last_layer_reference(x, params_full, onehot_slices, scale):
    """Pure-JAX reference mirroring the PyTorch forward exactly (includes the
    base-layer bias, which cancels through training-mode BatchNorm)."""
    wb, bb, gamma, beta, wh, bh = params_full
    h = x @ wb + bb
    mean = jnp.mean(h, axis=0, keepdims=True)
    var = jnp.mean((h - mean) ** 2, axis=0, keepdims=True)
    h = (h - mean) / jnp.sqrt(var + BN_EPS) * gamma + beta
    h = jnp.where(h >= 0.0, h, LEAKY_SLOPE * h)
    y = h @ wh + bh
    outs = [jax.nn.softmax(y[:, s:e], axis=-1) for (s, e) in onehot_slices]
    scalar_start = onehot_slices[-1][1] if onehot_slices else 0
    outs.append(jnp.tanh(y[:, scalar_start:]) * scale)
    return jnp.concatenate(outs, axis=-1)


def init_params(key, last_hidden_dim, head_dims):
    """Deterministic init mimicking nn.Linear default (uniform +-1/sqrt(fan_in));
    BatchNorm affine params perturbed from their defaults so that path is exercised."""
    H = last_hidden_dim
    out_dim = sum(head_dims)
    k = jax.random.split(key, 6)
    bound = 1.0 / (H ** 0.5)
    wb = jax.random.uniform(k[0], (H, H), jnp.float32, -bound, bound)
    bb = jax.random.uniform(k[1], (1, H), jnp.float32, -bound, bound)
    gamma = jnp.ones((1, H), jnp.float32) + 0.05 * jax.random.normal(k[2], (1, H), jnp.float32)
    beta = 0.05 * jax.random.normal(k[3], (1, H), jnp.float32)
    wh = jax.random.uniform(k[4], (H, out_dim), jnp.float32, -bound, bound)
    bh = jax.random.uniform(k[5], (1, out_dim), jnp.float32, -bound, bound)
    return (wb, bb, gamma, beta, wh, bh)


if __name__ == "__main__":
    N = 20                       # independent forward calls (exercises pad-to-nblk: 20 -> 24)
    B = 8                        # batch per call
    H = 32                       # last_hidden_dim
    onehot_head_dims = [4, 8]    # 'gender' (4 classes), 'age' (8 classes)
    scalar_dim = 4               # output_dim - onehot_dim_all
    head_dims = onehot_head_dims + [scalar_dim]
    output_dim = sum(head_dims)  # 16
    scale = 2.0                  # args.data_normalize_scale_value
    nblk = 8                     # 8 instances/grid step -> 128-lane output block (unmasked vst)

    onehot_slices = []
    off = 0
    for d in onehot_head_dims:
        onehot_slices.append((off, off + d))
        off += d

    key = jax.random.PRNGKey(0)
    kx, kp = jax.random.split(key)
    x = jax.random.normal(kx, (N, B, H), jnp.float32)
    full_params = init_params(kp, H, head_dims)
    wb, bb, gamma, beta, wh, bh = full_params
    kernel_params = (wb, gamma, beta, wh, bh)   # bb dropped: cancels through BatchNorm

    forward = make_last_layer(kernel_params, onehot_slices, H, output_dim, scale, nblk=nblk)

    out = jax.block_until_ready(forward(x))
    assert out.shape == (N, B, output_dim), out.shape

    max_err = 0.0
    for n in range(N):
        ref = last_layer_reference(x[n], full_params, onehot_slices, scale)
        err = float(jnp.max(jnp.abs(out[n] - ref)))
        max_err = max(max_err, err)
        assert err < 1e-4, f"instance {n}: max abs err {err}"

    # also exercise the single-call (B, H) path (pads up to one full lane-packed block)
    out1 = jax.block_until_ready(forward(x[0]))
    assert out1.shape == (B, output_dim), out1.shape
    assert float(jnp.max(jnp.abs(out1 - out[0]))) < 1e-5, "single-call path mismatch"

    print("KERNEL_OK")
</pallas_src>

<mosaic_0001>
module attributes {stable_mosaic.version = 11 : i64} {
  func.func @kernel(%arg0: i32, %arg1: memref<1x8x256xf32, #tpu.memory_space<vmem>>, %arg2: memref<256x384xf32, #tpu.memory_space<vmem>>, %arg3: memref<128x128xf32, #tpu.memory_space<vmem>>, %arg4: memref<5x256xf32, #tpu.memory_space<vmem>>, %arg5: memref<1x8x128xf32, #tpu.memory_space<vmem>>) attributes {dimension_semantics = [#tpu.dimension_semantics<parallel>], iteration_bounds = array<i64: 3>, scalar_prefetch = 0 : i64, scratch_operands = 0 : i64, tpu.core_type = #tpu.core_type<tc>, window_params = [{transform_indices = @transform_0, window_bounds = array<i64: 1, 8, 256>}, {pipeline_mode = #tpu.pipeline_mode<synchronous>, transform_indices = @transform_1, window_bounds = array<i64: 256, 384>}, {pipeline_mode = #tpu.pipeline_mode<synchronous>, transform_indices = @transform_2, window_bounds = array<i64: 128, 128>}, {pipeline_mode = #tpu.pipeline_mode<synchronous>, transform_indices = @transform_3, window_bounds = array<i64: 5, 256>}, {transform_indices = @transform_4, window_bounds = array<i64: 1, 8, 128>}]} {
    %c0 = arith.constant 0 : index
    %c0_0 = arith.constant 0 : index
    %c0_1 = arith.constant 0 : index
    %0 = vector.load %arg1[%c0, %c0_0, %c0_1] : memref<1x8x256xf32, #tpu.memory_space<vmem>>, vector<1x8x256xf32>
    %1 = vector.shape_cast %0 : vector<1x8x256xf32> to vector<8x256xf32>
    %c0_2 = arith.constant 0 : index
    %c0_3 = arith.constant 0 : index
    %2 = vector.load %arg2[%c0_2, %c0_3] : memref<256x384xf32, #tpu.memory_space<vmem>>, vector<256x256xf32>
    %cst = arith.constant dense<0.000000e+00> : vector<8x256xf32>
    %3 = tpu.matmul %1, %2, %cst {dimension_numbers = #tpu.dot_dimension_numbers<[1], [0], [0], [1], [0, 0, 1, 1], [], []>} : vector<8x256xf32>, vector<256x256xf32>, vector<8x256xf32> -> vector<8x256xf32>
    %cst_4 = arith.constant dense<0.000000e+00> : vector<256xf32>
    %4 = vector.multi_reduction <add>, %3, %cst_4 [0] : vector<8x256xf32> to vector<256xf32>
    %5 = vector.shape_cast %4 : vector<256xf32> to vector<1x256xf32>
    %cst_5 = arith.constant 8.000000e+00 : f32
    %6 = vector.broadcast %cst_5 : f32 to vector<1x256xf32>
    %7 = arith.divf %5, %6 : vector<1x256xf32>
    %8 = vector.broadcast %7 : vector<1x256xf32> to vector<8x256xf32>
    %9 = arith.subf %3, %8 : vector<8x256xf32>
    %10 = arith.mulf %9, %9 : vector<8x256xf32>
    %cst_6 = arith.constant dense<0.000000e+00> : vector<256xf32>
    %11 = vector.multi_reduction <add>, %10, %cst_6 [0] : vector<8x256xf32> to vector<256xf32>
    %12 = vector.shape_cast %11 : vector<256xf32> to vector<1x256xf32>
    %cst_7 = arith.constant 8.000000e+00 : f32
    %13 = vector.broadcast %cst_7 : f32 to vector<1x256xf32>
    %14 = arith.divf %12, %13 : vector<1x256xf32>
    %c0_8 = arith.constant 0 : index
    %c0_9 = arith.constant 0 : index
    %15 = vector.load %arg4[%c0_8, %c0_9] : memref<5x256xf32, #tpu.memory_space<vmem>>, vector<1x256xf32>
    %c1 = arith.constant 1 : index
    %c0_10 = arith.constant 0 : index
    %16 = vector.load %arg4[%c1, %c0_10] : memref<5x256xf32, #tpu.memory_space<vmem>>, vector<1x256xf32>
    %cst_11 = arith.constant 9.99999974E-6 : f32
    %17 = vector.broadcast %cst_11 : f32 to vector<1x256xf32>
    %18 = arith.addf %14, %17 : vector<1x256xf32>
    %19 = math.rsqrt %18 : vector<1x256xf32>
    %20 = vector.broadcast %19 : vector<1x256xf32> to vector<8x256xf32>
    %21 = arith.mulf %9, %20 : vector<8x256xf32>
    %22 = vector.broadcast %15 : vector<1x256xf32> to vector<8x256xf32>
    %23 = arith.mulf %21, %22 : vector<8x256xf32>
    %24 = vector.broadcast %16 : vector<1x256xf32> to vector<8x256xf32>
    %25 = arith.addf %23, %24 : vector<8x256xf32>
    %cst_12 = arith.constant 0.000000e+00 : f32
    %26 = vector.broadcast %cst_12 : f32 to vector<8x256xf32>
    %27 = arith.cmpf oge, %25, %26 : vector<8x256xf32>
    %cst_13 = arith.constant 0.00999999977 : f32
    %28 = vector.broadcast %cst_13 : f32 to vector<8x256xf32>
    %29 = arith.mulf %28, %25 : vector<8x256xf32>
    %30 = arith.select %27, %25, %29 : vector<8x256xi1>, vector<8x256xf32>
    %c2 = arith.constant 2 : index
    %c0_14 = arith.constant 0 : index
    %31 = vector.load %arg4[%c2, %c0_14] : memref<5x256xf32, #tpu.memory_space<vmem>>, vector<1x128xf32>
    %c0_15 = arith.constant 0 : index
    %c256 = arith.constant 256 : index
    %32 = vector.load %arg2[%c0_15, %c256] : memref<256x384xf32, #tpu.memory_space<vmem>>, vector<256x128xf32>
    %cst_16 = arith.constant dense<0.000000e+00> : vector<8x128xf32>
    %33 = tpu.matmul %30, %32, %cst_16 {dimension_numbers = #tpu.dot_dimension_numbers<[1], [0], [0], [1], [0, 0, 1, 1], [], []>} : vector<8x256xf32>, vector<256x128xf32>, vector<8x128xf32> -> vector<8x128xf32>
    %34 = vector.broadcast %31 : vector<1x128xf32> to vector<8x128xf32>
    %35 = arith.addf %33, %34 : vector<8x128xf32>
    %c3 = arith.constant 3 : index
    %c0_17 = arith.constant 0 : index
    %36 = vector.load %arg4[%c3, %c0_17] : memref<5x256xf32, #tpu.memory_space<vmem>>, vector<1x128xf32>
    %cst_18 = arith.constant 5.000000e-01 : f32
    %37 = vector.broadcast %cst_18 : f32 to vector<1x128xf32>
    %38 = arith.cmpf ogt, %36, %37 : vector<1x128xf32>
    %c4 = arith.constant 4 : index
    %c0_19 = arith.constant 0 : index
    %39 = vector.load %arg4[%c4, %c0_19] : memref<5x256xf32, #tpu.memory_space<vmem>>, vector<1x128xf32>
    %c0_20 = arith.constant 0 : index
    %c0_21 = arith.constant 0 : index
    %40 = vector.load %arg3[%c0_20, %c0_21] : memref<128x128xf32, #tpu.memory_space<vmem>>, vector<128x128xf32>
    %cst_22 = arith.constant dense<0.000000e+00> : vector<8x128xf32>
    %41 = tpu.matmul %35, %40, %cst_22 {dimension_numbers = #tpu.dot_dimension_numbers<[1], [0], [0], [1], [0, 0, 1, 1], [], []>} : vector<8x128xf32>, vector<128x128xf32>, vector<8x128xf32> -> vector<8x128xf32>
    %42 = vector.broadcast %39 : vector<1x128xf32> to vector<8x128xf32>
    %43 = arith.mulf %41, %42 : vector<8x128xf32>
    %44 = arith.subf %35, %43 : vector<8x128xf32>
    %cst_23 = arith.constant 0.000000e+00 : f32
    %45 = vector.shape_cast %38 : vector<1x128xi1> to vector<1x128xi1>
    %46 = vector.broadcast %45 : vector<1x128xi1> to vector<8x128xi1>
    %47 = vector.broadcast %cst_23 : f32 to vector<8x128xf32>
    %48 = arith.select %46, %44, %47 : vector<8x128xi1>, vector<8x128xf32>
    %49 = math.exp %48 : vector<8x128xf32>
    %cst_24 = arith.constant dense<0.000000e+00> : vector<8x128xf32>
    %50 = tpu.matmul %49, %40, %cst_24 {dimension_numbers = #tpu.dot_dimension_numbers<[1], [0], [0], [1], [0, 0, 1, 1], [], []>} : vector<8x128xf32>, vector<128x128xf32>, vector<8x128xf32> -> vector<8x128xf32>
    %cst_25 = arith.constant 1.000000e+00 : f32
    %51 = vector.shape_cast %38 : vector<1x128xi1> to vector<1x128xi1>
    %52 = vector.broadcast %51 : vector<1x128xi1> to vector<8x128xi1>
    %53 = vector.broadcast %cst_25 : f32 to vector<8x128xf32>
    %54 = arith.select %52, %50, %53 : vector<8x128xi1>, vector<8x128xf32>
    %55 = tpu.reciprocal %54 {approx = true} : vector<8x128xf32> -> vector<8x128xf32>
    %56 = arith.mulf %54, %55 : vector<8x128xf32>
    %cst_26 = arith.constant 2.000000e+00 : f32
    %57 = vector.broadcast %cst_26 : f32 to vector<8x128xf32>
    %58 = arith.subf %57, %56 : vector<8x128xf32>
    %59 = arith.mulf %55, %58 : vector<8x128xf32>
    %60 = arith.mulf %49, %59 : vector<8x128xf32>
    %61 = math.tanh %35 : vector<8x128xf32>
    %cst_27 = arith.constant 2.000000e+00 : f32
    %62 = vector.broadcast %cst_27 : f32 to vector<8x128xf32>
    %63 = arith.mulf %61, %62 : vector<8x128xf32>
    %64 = vector.shape_cast %38 : vector<1x128xi1> to vector<1x128xi1>
    %65 = vector.broadcast %64 : vector<1x128xi1> to vector<8x128xi1>
    %66 = arith.select %65, %60, %63 : vector<8x128xi1>, vector<8x128xf32>
    %c0_28 = arith.constant 0 : index
    %c0_29 = arith.constant 0 : index
    %c0_30 = arith.constant 0 : index
    %67 = vector.load %arg5[%c0_28, %c0_29, %c0_30] : memref<1x8x128xf32, #tpu.memory_space<vmem>>, vector<1x8x128xf32>
    %68 = vector.shape_cast %67 : vector<1x8x128xf32> to vector<8x128xf32>
    %69 = vector.shape_cast %66 : vector<8x128xf32> to vector<1x8x128xf32>
    tpu.vector_store %arg5[%c0_28, %c0_29, %c0_30], %69 {strides = array<i32>} : memref<1x8x128xf32, #tpu.memory_space<vmem>>, vector<1x8x128xf32>,
    return
  }
  func.func @transform_0(%arg0: i32) -> (i32, i32, i32) {
    %c0_i32 = arith.constant 0 : i32
    %c0_i32_0 = arith.constant 0 : i32
    %c0_i32_1 = arith.constant 0 : i32
    return %arg0, %c0_i32, %c0_i32_0 : i32, i32, i32
  }
  func.func @transform_1(%arg0: i32) -> (i32, i32) {
    %c0_i32 = arith.constant 0 : i32
    %c0_i32_0 = arith.constant 0 : i32
    %c0_i32_1 = arith.constant 0 : i32
    return %c0_i32, %c0_i32_0 : i32, i32
  }
  func.func @transform_2(%arg0: i32) -> (i32, i32) {
    %c0_i32 = arith.constant 0 : i32
    %c0_i32_0 = arith.constant 0 : i32
    %c0_i32_1 = arith.constant 0 : i32
    return %c0_i32, %c0_i32_0 : i32, i32
  }
  func.func @transform_3(%arg0: i32) -> (i32, i32) {
    %c0_i32 = arith.constant 0 : i32
    %c0_i32_0 = arith.constant 0 : i32
    %c0_i32_1 = arith.constant 0 : i32
    return %c0_i32, %c0_i32_0 : i32, i32
  }
  func.func @transform_4(%arg0: i32) -> (i32, i32, i32) {
    %c0_i32 = arith.constant 0 : i32
    %c0_i32_0 = arith.constant 0 : i32
    %c0_i32_1 = arith.constant 0 : i32
    return %arg0, %c0_i32, %c0_i32_0 : i32, i32, i32
  }
}

</mosaic_0001>

<llo_original>
// kernel: forward.1
$region0: #{forward.1}
  #allocation0 [shape = 'u32[]', space=smem, size = 0x4, offset = 0x4, fixed_abs, tag = 'smem constant byte address 0x4 - core index']
  #allocation1 [shape = 'u32[144,128]{1,0:T(1,128)}', space=vmem, size = 0x12000, scoped, tag = 'internal scratch']
  %s0 = inlined_call_operand.vmem [shape: f32[3,8,256], index: 0, kind: input, shape index: {}]
  %s1 = inlined_call_operand.vmem [shape: f32[256,384], index: 1, kind: input, shape index: {}]
  %s2 = inlined_call_operand.vmem [shape: f32[128,128], index: 2, kind: input, shape index: {}]
  %s3 = inlined_call_operand.vmem [shape: f32[5,256], index: 3, kind: input, shape index: {}]
  %s4 = inlined_call_operand.vmem [shape: f32[3,8,128], index: 4, kind: output, shape index: {}]
  %s5 = sld [smem:[#allocation0]]
  $region49: #{forward.1} parent=0
    _
  %s7 = ssub.s32 1, %s5
  %s8 = scalar_select 0, %s7, %s5
  loop: start=0, step=1, limit=5
  $region2: #{forward.1} parent=0 // loop_pre_header
    _
  $region3: #{forward.1} parent=0 // loop_header
    %s10 = sphi 0, %s14
    %p11 = scmp.ge.s32.totalorder %s10, 5
    %s20 = sphi 0, %s22
    %s23 = sphi 0, %s20
    %s24 = sphi 0, %s23
    %s40 = sphi 0, %s24
    %s44 = sphi 0, %s44
    %s46 = sphi 0, %s44
    %s47 = sphi 0, %s46
    %s61 = sphi 0, %s47
    %s65 = sphi 0, %s65
    %s67 = sphi 0, %s65
    %s68 = sphi 0, %s67
    %s82 = sphi 0, %s68
    %s86 = sphi 0, %s86
    %s88 = sphi 0, %s86
    %s89 = sphi 0, %s88
    %s103 = sphi 0, %s89
    %s109 = sphi 0, %s111
    %s112 = sphi 0, %s109
    %s113 = sphi 0, %s112
    %s129 = sphi 0, %s113
  $region4: #{forward.1} parent=0 // loop_header_branch
    %13 = sbr.rel (%p11) target = $region8
  $region5: #{forward.1} parent=0 // loop_body
    %s15 = ssub.s32 %s10, 1
    %s16 = ssub.s32 %s10, 2
    %s17 = sadd.s32 %s10, 1
    %s18 = ssub.s32 %s10, %s17
    %p19 = scmp.eq.s32.totalorder %s18, 0
    %s21 = sadd.s32 %s20, 1
    %s22 = scalar_select %p19, %s20, %s21
    %p25 = pneg %p19
    %p26 = scmp.eq.s32.totalorder %s10, 2
    %p27 = por %p25, %p26
    %p28 = scmp.ne.s32.totalorder %s20, %s23
    %p29 = scmp.eq.s32.totalorder %s10, 0
    %p30 = por %p28, %p29
    %p31 = scmp.ne.s32.totalorder %s20, %s23
    %p32 = scmp.eq.s32.totalorder %s15, 2
    %p33 = por %p31, %p32
    %p34 = scmp.ne.s32.totalorder %s23, %s24
    %p35 = scmp.eq.s32.totalorder %s15, 0
    %p36 = por %p34, %p35
    %p37 = scmp.ne.s32.totalorder %s23, %s24
    %p38 = scmp.eq.s32.totalorder %s16, 2
    %p39 = por %p37, %p38
    %p41 = scmp.ne.s32.totalorder %s24, %s40
    %p42 = scmp.eq.s32.totalorder %s16, 0
    %p43 = por %p41, %p42
    %s45 = sadd.s32 %s44, 1
    %p48 = scmp.eq.s32.totalorder %s10, 2
    %p49 = scmp.ne.s32.totalorder %s44, %s46
    %p50 = scmp.eq.s32.totalorder %s10, 0
    %p51 = por %p49, %p50
    %p52 = scmp.ne.s32.totalorder %s44, %s46
    %p53 = scmp.eq.s32.totalorder %s15, 2
    %p54 = por %p52, %p53
    %p55 = scmp.ne.s32.totalorder %s46, %s47
    %p56 = scmp.eq.s32.totalorder %s15, 0
    %p57 = por %p55, %p56
    %p58 = scmp.ne.s32.totalorder %s46, %s47
    %p59 = scmp.eq.s32.totalorder %s16, 2
    %p60 = por %p58, %p59
    %p62 = scmp.ne.s32.totalorder %s47, %s61
    %p63 = scmp.eq.s32.totalorder %s16, 0
    %p64 = por %p62, %p63
    %s66 = sadd.s32 %s65, 1
    %p69 = scmp.eq.s32.totalorder %s10, 2
    %p70 = scmp.ne.s32.totalorder %s65, %s67
    %p71 = scmp.eq.s32.totalorder %s10, 0
    %p72 = por %p70, %p71
    %p73 = scmp.ne.s32.totalorder %s65, %s67
    %p74 = scmp.eq.s32.totalorder %s15, 2
    %p75 = por %p73, %p74
    %p76 = scmp.ne.s32.totalorder %s67, %s68
    %p77 = scmp.eq.s32.totalorder %s15, 0
    %p78 = por %p76, %p77
    %p79 = scmp.ne.s32.totalorder %s67, %s68
    %p80 = scmp.eq.s32.totalorder %s16, 2
    %p81 = por %p79, %p80
    %p83 = scmp.ne.s32.totalorder %s68, %s82
    %p84 = scmp.eq.s32.totalorder %s16, 0
    %p85 = por %p83, %p84
    %s87 = sadd.s32 %s86, 1
    %p90 = scmp.eq.s32.totalorder %s10, 2
    %p91 = scmp.ne.s32.totalorder %s86, %s88
    %p92 = scmp.eq.s32.totalorder %s10, 0
    %p93 = por %p91, %p92
    %p94 = scmp.ne.s32.totalorder %s86, %s88
    %p95 = scmp.eq.s32.totalorder %s15, 2
    %p96 = por %p94, %p95
    %p97 = scmp.ne.s32.totalorder %s88, %s89
    %p98 = scmp.eq.s32.totalorder %s15, 0
    %p99 = por %p97, %p98
    %p100 = scmp.ne.s32.totalorder %s88, %s89
    %p101 = scmp.eq.s32.totalorder %s16, 2
    %p102 = por %p100, %p101
    %p104 = scmp.ne.s32.totalorder %s89, %s103
    %p105 = scmp.eq.s32.totalorder %s16, 0
    %p106 = por %p104, %p105
    %s107 = ssub.s32 %s10, %s17
    %p108 = scmp.eq.s32.totalorder %s107, 0
    %s110 = sadd.s32 %s109, 1
    %s111 = scalar_select %p108, %s109, %s110
    %p114 = pneg %p108
    %p115 = scmp.eq.s32.totalorder %s10, 2
    %p116 = por %p114, %p115
    %p117 = scmp.ne.s32.totalorder %s109, %s112
    %p118 = scmp.eq.s32.totalorder %s10, 0
    %p119 = por %p117, %p118
    %p120 = scmp.ne.s32.totalorder %s109, %s112
    %p121 = scmp.eq.s32.totalorder %s15, 2
    %p122 = por %p120, %p121
    %p123 = scmp.ne.s32.totalorder %s112, %s113
    %p124 = scmp.eq.s32.totalorder %s15, 0
    %p125 = por %p123, %p124
    %p126 = scmp.ne.s32.totalorder %s112, %s113
    %p127 = scmp.eq.s32.totalorder %s16, 2
    %p128 = por %p126, %p127
    %p130 = scmp.ne.s32.totalorder %s113, %s129
    %p131 = scmp.eq.s32.totalorder %s16, 0
    %p132 = por %p130, %p131
    %p133 = scmp.le.s32.totalorder 1, %s10
    %p134 = scmp.lt.s32.totalorder %s10, 4
    %p135 = pnand %p133, %p134
    %p136 = pneg %p135
    // Predicated region
    $region9: #{forward.1} parent=5 // pred_check
      _
    $region10: #{forward.1} parent=5 // pred_check_branch
      %138 = sbr.rel (%p135) target = $region12
    $region11: #{forward.1} parent=5 // pred_region
      %s139 = ssub.s32 %s10, 1
      // Predicated region
      $region13: #{forward.1} parent=11 // pred_check
        %p140 = pneg %p57
      $region14: #{forward.1} parent=11 // pred_check_branch
        %142 = sbr.rel (%p140) target = $region16
      $region15: #{forward.1} parent=11 // pred_region
        _
      $region16: #{forward.1} parent=11 // pred_fallthru
        _
      // Predicated region
      $region17: #{forward.1} parent=11 // pred_check
        %p143 = pneg %p78
      $region18: #{forward.1} parent=11 // pred_check_branch
        %145 = sbr.rel (%p143) target = $region20
      $region19: #{forward.1} parent=11 // pred_region
        _
      $region20: #{forward.1} parent=11 // pred_fallthru
        _
      // Predicated region
      $region21: #{forward.1} parent=11 // pred_check
        %p146 = pneg %p99
      $region22: #{forward.1} parent=11 // pred_check_branch
        %148 = sbr.rel (%p146) target = $region24
      $region23: #{forward.1} parent=11 // pred_region
        _
      $region24: #{forward.1} parent=11 // pred_fallthru
        _
    $region12: #{forward.1} parent=5 // pred_fallthru
      _
    %p149 = scmp.lt.s32.totalorder %s10, 3
    // Predicated region
    $region25: #{forward.1} parent=5 // pred_check
      %p150 = pneg %p149
    $region26: #{forward.1} parent=5 // pred_check_branch
      %152 = sbr.rel (%p150) target = $region28
    $region27: #{forward.1} parent=5 // pred_region
      // Predicated region
      $region29: #{forward.1} parent=27 // pred_check
        %p153 = pneg %p30
      $region30: #{forward.1} parent=27 // pred_check_branch
        %155 = sbr.rel (%p153) target = $region32
      $region31: #{forward.1} parent=27 // pred_region
        %p156 = scmp.lt.s32.totalorder %s10, 2
        %s157 = scalar_select %p156, %s10, 2
        %s158 = smul.addr %s157, 2
        %s159 = smul.addr %s158, 8
        %s160 = scalar_lea.vmem %s0, %s159
      $region32: #{forward.1} parent=27 // pred_fallthru
        _
    $region28: #{forward.1} parent=5 // pred_fallthru
      _
    %p161 = scmp.le.s32.totalorder 1, %s10
    %p162 = scmp.lt.s32.totalorder %s10, 4
    %p163 = pnand %p161, %p162
    %p164 = pneg %p163
    // Predicated region
    $region33: #{forward.1} parent=5 // pred_check
      _
    $region34: #{forward.1} parent=5 // pred_check_branch
      %166 = sbr.rel (%p163) target = $region36
    $region35: #{forward.1} parent=5 // pred_region
      %s167 = ssub.s32 %s10, 1
      %p168 = scmp.lt.s32.totalorder %s15, 2
      %s169 = scalar_select %p168, %s15, 2
      %s170 = smul.addr %s169, 2
      %s171 = smul.addr %s170, 8
      %s172 = scalar_lea.vmem %s0, %s171
      %p173 = pneg %p36
      %p174 = pneg %p33
      %p175 = pneg %p57
      %p176 = pneg %p54
      %p177 = pneg %p78
      %p178 = pneg %p75
      %p179 = pneg %p99
      %p180 = pneg %p96
      %p181 = pneg %p125
      %p182 = pneg %p122
      %p183 = scmp.lt.s32.totalorder %s15, 2
      %s184 = scalar_select %p183, %s15, 2
      %s185 = smul.addr %s184, 8
      %s186 = scalar_lea.vmem %s4, %s185
      %p187 = scmp.lt.s32.totalorder %s15, 2
      %s188 = scalar_select %p187, %s15, 2
      %s189 = smul.addr %s188, 2
      %s190 = smul.addr %s189, 8
      %s191 = scalar_lea.vmem %s0, %s190
      %p192 = scmp.lt.s32.totalorder %s15, 2
      %s193 = scalar_select %p192, %s15, 2
      %s194 = smul.addr %s193, 8
      %s195 = scalar_lea.vmem %s4, %s194
      %v196 = vld [vmem:[%s191] sm:$0xff]
      %v197 = vld [vmem:[%s191 + $0x8] sm:$0xff]
      %v198 = vld [vmem:[%s1] sm:$0xff]
      %v199 = vld [vmem:[%s1 + $0x8] sm:$0xff]
      %v200 = vld [vmem:[%s1 + $0x18] sm:$0xff]
      %v201 = vld [vmem:[%s1 + $0x20] sm:$0xff]
      %v202 = vld [vmem:[%s1 + $0x30] sm:$0xff]
      %v203 = vld [vmem:[%s1 + $0x38] sm:$0xff]
      %v204 = vld [vmem:[%s1 + $0x48] sm:$0xff]
      %v205 = vld [vmem:[%s1 + $0x50] sm:$0xff]
      %v206 = vld [vmem:[%s1 + $0x60] sm:$0xff]
      %v207 = vld [vmem:[%s1 + $0x68] sm:$0xff]
      %v208 = vld [vmem:[%s1 + $0x78] sm:$0xff]
      %v209 = vld [vmem:[%s1 + $0x80] sm:$0xff]
      %v210 = vld [vmem:[%s1 + $0x90] sm:$0xff]
      %v211 = vld [vmem:[%s1 + $0x98] sm:$0xff]
      %v212 = vld [vmem:[%s1 + $0xa8] sm:$0xff]
      %v213 = vld [vmem:[%s1 + $0xb0] sm:$0xff]
      %v214 = vld [vmem:[%s1 + $0xc0] sm:$0xff]
      %v215 = vld [vmem:[%s1 + $0xc8] sm:$0xff]
      %v216 = vld [vmem:[%s1 + $0xd8] sm:$0xff]
      %v217 = vld [vmem:[%s1 + $0xe0] sm:$0xff]
      %v218 = vld [vmem:[%s1 + $0xf0] sm:$0xff]
      %v219 = vld [vmem:[%s1 + $0xf8] sm:$0xff]
      %v220 = vld [vmem:[%s1 + $0x108] sm:$0xff]
      %v221 = vld [vmem:[%s1 + $0x110] sm:$0xff]
      %v222 = vld [vmem:[%s1 + $0x120] sm:$0xff]
      %v223 = vld [vmem:[%s1 + $0x128] sm:$0xff]
      %v224 = vld [vmem:[%s1 + $0x138] sm:$0xff]
      %v225 = vld [vmem:[%s1 + $0x140] sm:$0xff]
      %v226 = vld [vmem:[%s1 + $0x150] sm:$0xff]
      %v227 = vld [vmem:[%s1 + $0x158] sm:$0xff]
      %v228 = vld [vmem:[%s1 + $0x168] sm:$0xff]
      %v229 = vld [vmem:[%s1 + $0x170] sm:$0xff]
      %v230 = vld [vmem:[%s1 + $0x180] sm:$0xff]
      %v231 = vld [vmem:[%s1 + $0x188] sm:$0xff]
      %v232 = vld [vmem:[%s1 + $0x198] sm:$0xff]
      %v233 = vld [vmem:[%s1 + $0x1a0] sm:$0xff]
      %v234 = vld [vmem:[%s1 + $0x1b0] sm:$0xff]
      %v235 = vld [vmem:[%s1 + $0x1b8] sm:$0xff]
      %v236 = vld [vmem:[%s1 + $0x1c8] sm:$0xff]
      %v237 = vld [vmem:[%s1 + $0x1d0] sm:$0xff]
      %v238 = vld [vmem:[%s1 + $0x1e0] sm:$0xff]
      %v239 = vld [vmem:[%s1 + $0x1e8] sm:$0xff]
      %v240 = vld [vmem:[%s1 + $0x1f8] sm:$0xff]
      %v241 = vld [vmem:[%s1 + $0x200] sm:$0xff]
      %v242 = vld [vmem:[%s1 + $0x210] sm:$0xff]
      %v243 = vld [vmem:[%s1 + $0x218] sm:$0xff]
      %v244 = vld [vmem:[%s1 + $0x228] sm:$0xff]
      %v245 = vld [vmem:[%s1 + $0x230] sm:$0xff]
      %v246 = vld [vmem:[%s1 + $0x240] sm:$0xff]
      %v247 = vld [vmem:[%s1 + $0x248] sm:$0xff]
      %v248 = vld [vmem:[%s1 + $0x258] sm:$0xff]
      %v249 = vld [vmem:[%s1 + $0x260] sm:$0xff]
      %v250 = vld [vmem:[%s1 + $0x270] sm:$0xff]
      %v251 = vld [vmem:[%s1 + $0x278] sm:$0xff]
      %v252 = vld [vmem:[%s1 + $0x288] sm:$0xff]
      %v253 = vld [vmem:[%s1 + $0x290] sm:$0xff]
      %v254 = vld [vmem:[%s1 + $0x2a0] sm:$0xff]
      %v255 = vld [vmem:[%s1 + $0x2a8] sm:$0xff]
      %v256 = vld [vmem:[%s1 + $0x2b8] sm:$0xff]
      %v257 = vld [vmem:[%s1 + $0x2c0] sm:$0xff]
      %v258 = vld [vmem:[%s1 + $0x2d0] sm:$0xff]
      %v259 = vld [vmem:[%s1 + $0x2d8] sm:$0xff]
      %v260 = vld [vmem:[%s1 + $0x2e8] sm:$0xff]
      %v261 = vld [vmem:[%s1 + $0x2f0] sm:$0xff]
      %262 = vmatprep.subr.mxu0 %v199
      %263 = vmatpush1.msra.mxu0 %v198
      %264 = vmatprep.subr.mxu0 %v201
      %265 = vmatpush1.msra.mxu0 %v200
      %266 = vmatprep.subr.mxu0 %v203
      %267 = vmatpush1.msra.mxu0 %v202
      %268 = vmatprep.subr.mxu0 %v205
      %269 = vmatpush1.msra.mxu0 %v204
      %270 = vmatprep.subr.mxu0 %v207
      %271 = vmatpush1.msra.mxu0 %v206
      %272 = vmatprep.subr.mxu0 %v209
      %273 = vmatpush1.msra.mxu0 %v208
      %274 = vmatprep.subr.mxu0 %v211
      %275 = vmatpush1.msra.mxu0 %v210
      %276 = vmatprep.subr.mxu0 %v213
      %277 = vmatpush1.msra.mxu0 %v212
      %278 = vmatprep.subr.mxu0 %v215
      %279 = vmatpush1.msra.mxu0 %v214
      %280 = vmatprep.subr.mxu0 %v217
      %281 = vmatpush1.msra.mxu0 %v216
      %282 = vmatprep.subr.mxu0 %v219
      %283 = vmatpush1.msra.mxu0 %v218
      %284 = vmatprep.subr.mxu0 %v221
      %285 = vmatpush1.msra.mxu0 %v220
      %286 = vmatprep.subr.mxu0 %v223
      %287 = vmatpush1.msra.mxu0 %v222
      %288 = vmatprep.subr.mxu0 %v225
      %289 = vmatpush1.msra.mxu0 %v224
      %290 = vmatprep.subr.mxu0 %v227
      %291 = vmatpush1.msra.mxu0 %v226
      %292 = vmatprep.subr.mxu0 %v229
      %293 = vmatpush1.msra.mxu0 %v228
      %294 = vmatprep.subr.mxu0 %v231
      %295 = vmatpush1.msra.mxu0 %v230
      %296 = vmatprep.subr.mxu0 %v233
      %297 = vmatpush1.msra.mxu0 %v232
      %298 = vmatprep.subr.mxu0 %v235
      %299 = vmatpush1.msra.mxu0 %v234
      %300 = vmatprep.subr.mxu0 %v237
      %301 = vmatpush1.msra.mxu0 %v236
      %302 = vmatprep.subr.mxu0 %v239
      %303 = vmatpush1.msra.mxu0 %v238
      %304 = vmatprep.subr.mxu0 %v241
      %305 = vmatpush1.msra.mxu0 %v240
      %306 = vmatprep.subr.mxu0 %v243
      %307 = vmatpush1.msra.mxu0 %v242
      %308 = vmatprep.subr.mxu0 %v245
      %309 = vmatpush1.msra.mxu0 %v244
      %310 = vmatprep.subr.mxu0 %v247
      %311 = vmatpush1.msra.mxu0 %v246
      %312 = vmatprep.subr.mxu0 %v249
      %313 = vmatpush1.msra.mxu0 %v248
      %314 = vmatprep.subr.mxu0 %v251
      %315 = vmatpush1.msra.mxu0 %v250
      %316 = vmatprep.subr.mxu0 %v253
      %317 = vmatpush1.msra.mxu0 %v252
      %318 = vmatprep.subr.mxu0 %v255
      %319 = vmatpush1.msra.mxu0 %v254
      %320 = vmatprep.subr.mxu0 %v257
      %321 = vmatpush1.msra.mxu0 %v256
      %322 = vmatprep.subr.mxu0 %v259
      %323 = vmatpush1.msra.mxu0 %v258
      %324 = vmatprep.subr.mxu0 %v261
      %325 = vmatpush1.msra.mxu0 %v260
      %326 = vmatprep.mubr.f32.mxu0 %v197
      %327 = vmatmul.mubr.f32.gmra.mrb[0].mxu0 %v196
      %v328 = vpop.f32.mrb[0].mxu0
      %v329 = vadd.f32 0.0, %v328
      %v330 = vpop.f32.mrb[0].mxu0
      %v331 = vadd.f32 0.0, %v330
      %332 = vdwg.mxu0
      %v333 = vrot.slane %v329, 4
      %v334 = vadd.f32 %v329, %v333
      %v335 = vrot.slane %v334, 2
      %v336 = vadd.f32 %v334, %v335
      %v337 = vrot.slane %v336, 1
      %v338 = vadd.f32 %v336, %v337
      %v339 = vrot.slane %v331, 4
      %v340 = vadd.f32 %v331, %v339
      %v341 = vrot.slane %v340, 2
      %v342 = vadd.f32 %v340, %v341
      %v343 = vrot.slane %v342, 1
      %v344 = vadd.f32 %v342, %v343
      %v345 = vrcp.pop 8.0
      %v346 = vmul.f32 %v338, %v345
      %v347 = vmul.f32 %v344, %v345
      %v348 = vsub.f32 %v329, %v346
      %v349 = vsub.f32 %v331, %v347
      %v350 = vmul.f32 %v348, %v348
      %v351 = vmul.f32 %v349, %v349
      %v352 = vrot.slane %v350, 4
      %v353 = vadd.f32 %v350, %v352
      %v354 = vrot.slane %v353, 2
      %v355 = vadd.f32 %v353, %v354
      %v356 = vrot.slane %v355, 1
      %v357 = vadd.f32 %v355, %v356
      %v358 = vrot.slane %v351, 4
      %v359 = vadd.f32 %v351, %v358
      %v360 = vrot.slane %v359, 2
      %v361 = vadd.f32 %v359, %v360
      %v362 = vrot.slane %v361, 1
      %v363 = vadd.f32 %v361, %v362
      %v364 = vmul.f32 %v357, %v345
      %v365 = vmul.f32 %v363, %v345
      %v366 = vld [vmem:[%s3] ss:$8 sm:$0x3]
      %s367 = scalar_lea.vmem %s3, 1
      %v368 = vld [vmem:[%s367] ss:$8 sm:$0x3]
      %v369 = vadd.f32 %v364, 1e-05
      %v370 = vadd.f32 %v365, 1e-05
      %v371 = vrsqrt.pop %v369
      %v372 = vrsqrt.pop %v370
      %v373 = vmul.f32 %v348, %v371
      %v374 = vmul.f32 %v349, %v372
      %v376 = vlaneseq
      %v377 = vshrl.u32 %v376, 7
      %v378 = vsub.s32 0, %v377
      %v379 = vrot.slane %v366, %v378
      %v380 = vlaneseq
      %v381 = vshrl.u32 %v380, 7
      %v382 = vsub.s32 1, %v381
      %v383 = vrot.slane %v366, %v382
      %v386 = vmul.f32 %v373, %v379
      %v387 = vmul.f32 %v374, %v383
      %v389 = vlaneseq
      %v390 = vshrl.u32 %v389, 7
      %v391 = vsub.s32 0, %v390
      %v392 = vrot.slane %v368, %v391
      %v393 = vlaneseq
      %v394 = vshrl.u32 %v393, 7
      %v395 = vsub.s32 1, %v394
      %v396 = vrot.slane %v368, %v395
      %v399 = vadd.f32 %v386, %v392
      %v400 = vadd.f32 %v387, %v396
      %vm401 = vcmp.ge.f32.partialorder %v399, 0.0
      %vm402 = vcmp.ge.f32.partialorder %v400, 0.0
      %v403 = vmul.f32 %v399, 0.01
      %v404 = vmul.f32 %v400, 0.01
      %v405 = vsel %vm401, %v399, %v403
      %v406 = vsel %vm402, %v400, %v404
      %v407 = vld [vmem:[%s3 + $0x2] ss:$0 sm:$0xff]
      %v408 = vld [vmem:[%s1 + $0x10] sm:$0xff]
      %v409 = vld [vmem:[%s1 + $0x28] sm:$0xff]
      %v410 = vld [vmem:[%s1 + $0x40] sm:$0xff]
      %v411 = vld [vmem:[%s1 + $0x58] sm:$0xff]
      %v412 = vld [vmem:[%s1 + $0x70] sm:$0xff]
      %v413 = vld [vmem:[%s1 + $0x88] sm:$0xff]
      %v414 = vld [vmem:[%s1 + $0xa0] sm:$0xff]
      %v415 = vld [vmem:[%s1 + $0xb8] sm:$0xff]
      %v416 = vld [vmem:[%s1 + $0xd0] sm:$0xff]
      %v417 = vld [vmem:[%s1 + $0xe8] sm:$0xff]
      %v418 = vld [vmem:[%s1 + $0x100] sm:$0xff]
      %v419 = vld [vmem:[%s1 + $0x118] sm:$0xff]
      %v420 = vld [vmem:[%s1 + $0x130] sm:$0xff]
      %v421 = vld [vmem:[%s1 + $0x148] sm:$0xff]
      %v422 = vld [vmem:[%s1 + $0x160] sm:$0xff]
      %v423 = vld [vmem:[%s1 + $0x178] sm:$0xff]
      %v424 = vld [vmem:[%s1 + $0x190] sm:$0xff]
      %v425 = vld [vmem:[%s1 + $0x1a8] sm:$0xff]
      %v426 = vld [vmem:[%s1 + $0x1c0] sm:$0xff]
      %v427 = vld [vmem:[%s1 + $0x1d8] sm:$0xff]
      %v428 = vld [vmem:[%s1 + $0x1f0] sm:$0xff]
      %v429 = vld [vmem:[%s1 + $0x208] sm:$0xff]
      %v430 = vld [vmem:[%s1 + $0x220] sm:$0xff]
      %v431 = vld [vmem:[%s1 + $0x238] sm:$0xff]
      %v432 = vld [vmem:[%s1 + $0x250] sm:$0xff]
      %v433 = vld [vmem:[%s1 + $0x268] sm:$0xff]
      %v434 = vld [vmem:[%s1 + $0x280] sm:$0xff]
      %v435 = vld [vmem:[%s1 + $0x298] sm:$0xff]
      %v436 = vld [vmem:[%s1 + $0x2b0] sm:$0xff]
      %v437 = vld [vmem:[%s1 + $0x2c8] sm:$0xff]
      %v438 = vld [vmem:[%s1 + $0x2e0] sm:$0xff]
      %v439 = vld [vmem:[%s1 + $0x2f8] sm:$0xff]
      %440 = vmatprep.subr.mxu0 0.0
      %441 = vmatpush1.msra.mxu0 %v408
      %442 = vmatprep.subr.mxu0 0.0
      %443 = vmatpush1.msra.mxu0 %v409
      %444 = vmatprep.subr.mxu0 0.0
      %445 = vmatpush1.msra.mxu0 %v410
      %446 = vmatprep.subr.mxu0 0.0
      %447 = vmatpush1.msra.mxu0 %v411
      %448 = vmatprep.subr.mxu0 0.0
      %449 = vmatpush1.msra.mxu0 %v412
      %450 = vmatprep.subr.mxu0 0.0
      %451 = vmatpush1.msra.mxu0 %v413
      %452 = vmatprep.subr.mxu0 0.0
      %453 = vmatpush1.msra.mxu0 %v414
      %454 = vmatprep.subr.mxu0 0.0
      %455 = vmatpush1.msra.mxu0 %v415
      %456 = vmatprep.subr.mxu0 0.0
      %457 = vmatpush1.msra.mxu0 %v416
      %458 = vmatprep.subr.mxu0 0.0
      %459 = vmatpush1.msra.mxu0 %v417
      %460 = vmatprep.subr.mxu0 0.0
      %461 = vmatpush1.msra.mxu0 %v418
      %462 = vmatprep.subr.mxu0 0.0
      %463 = vmatpush1.msra.mxu0 %v419
      %464 = vmatprep.subr.mxu0 0.0
      %465 = vmatpush1.msra.mxu0 %v420
      %466 = vmatprep.subr.mxu0 0.0
      %467 = vmatpush1.msra.mxu0 %v421
      %468 = vmatprep.subr.mxu0 0.0
      %469 = vmatpush1.msra.mxu0 %v422
      %470 = vmatprep.subr.mxu0 0.0
      %471 = vmatpush1.msra.mxu0 %v423
      %472 = vmatprep.subr.mxu0 0.0
      %473 = vmatpush1.msra.mxu0 %v424
      %474 = vmatprep.subr.mxu0 0.0
      %475 = vmatpush1.msra.mxu0 %v425
      %476 = vmatprep.subr.mxu0 0.0
      %477 = vmatpush1.msra.mxu0 %v426
      %478 = vmatprep.subr.mxu0 0.0
      %479 = vmatpush1.msra.mxu0 %v427
      %480 = vmatprep.subr.mxu0 0.0
      %481 = vmatpush1.msra.mxu0 %v428
      %482 = vmatprep.subr.mxu0 0.0
      %483 = vmatpush1.msra.mxu0 %v429
      %484 = vmatprep.subr.mxu0 0.0
      %485 = vmatpush1.msra.mxu0 %v430
      %486 = vmatprep.subr.mxu0 0.0
      %487 = vmatpush1.msra.mxu0 %v431
      %488 = vmatprep.subr.mxu0 0.0
      %489 = vmatpush1.msra.mxu0 %v432
      %490 = vmatprep.subr.mxu0 0.0
      %491 = vmatpush1.msra.mxu0 %v433
      %492 = vmatprep.subr.mxu0 0.0
      %493 = vmatpush1.msra.mxu0 %v434
      %494 = vmatprep.subr.mxu0 0.0
      %495 = vmatpush1.msra.mxu0 %v435
      %496 = vmatprep.subr.mxu0 0.0
      %497 = vmatpush1.msra.mxu0 %v436
      %498 = vmatprep.subr.mxu0 0.0
      %499 = vmatpush1.msra.mxu0 %v437
      %500 = vmatprep.subr.mxu0 0.0
      %501 = vmatpush1.msra.mxu0 %v438
      %502 = vmatprep.subr.mxu0 0.0
      %503 = vmatpush1.msra.mxu0 %v439
      %504 = vmatprep.mubr.f32.mxu0 %v406
      %505 = vmatmul.mubr.f32.gmra.mrb[0].mxu0 %v405
      %v506 = vpop.f32.mrb[0].mxu0
      %v507 = vadd.f32 %v407, %v506
      %v508 = vpop.f32.mrb[0].mxu0
      %509 = vdwg.mxu0
      %v510 = vld [vmem:[%s3 + $0x3] ss:$0 sm:$0xff]
      %vm511 = vcmp.gt.f32.partialorder %v510, 0.5
      %v512 = vld [vmem:[%s3 + $0x4] ss:$0 sm:$0xff]
      %v513 = vld [vmem:[%s2] sm:$0xff]
      %v514 = vld [vmem:[%s2 + $0x8] sm:$0xff]
      %v515 = vld [vmem:[%s2 + $0x10] sm:$0xff]
      %v516 = vld [vmem:[%s2 + $0x18] sm:$0xff]
      %v517 = vld [vmem:[%s2 + $0x20] sm:$0xff]
      %v518 = vld [vmem:[%s2 + $0x28] sm:$0xff]
      %v519 = vld [vmem:[%s2 + $0x30] sm:$0xff]
      %v520 = vld [vmem:[%s2 + $0x38] sm:$0xff]
      %v521 = vld [vmem:[%s2 + $0x40] sm:$0xff]
      %v522 = vld [vmem:[%s2 + $0x48] sm:$0xff]
      %v523 = vld [vmem:[%s2 + $0x50] sm:$0xff]
      %v524 = vld [vmem:[%s2 + $0x58] sm:$0xff]
      %v525 = vld [vmem:[%s2 + $0x60] sm:$0xff]
      %v526 = vld [vmem:[%s2 + $0x68] sm:$0xff]
      %v527 = vld [vmem:[%s2 + $0x70] sm:$0xff]
      %v528 = vld [vmem:[%s2 + $0x78] sm:$0xff]
      %529 = vmatprep.subr.mxu0 0.0
      %530 = vmatpush1.msra.mxu0 %v513
      %531 = vmatprep.subr.mxu0 0.0
      %532 = vmatpush1.msra.mxu0 %v514
      %533 = vmatprep.subr.mxu0 0.0
      %534 = vmatpush1.msra.mxu0 %v515
      %535 = vmatprep.subr.mxu0 0.0
      %536 = vmatpush1.msra.mxu0 %v516
      %537 = vmatprep.subr.mxu0 0.0
      %538 = vmatpush1.msra.mxu0 %v517
      %539 = vmatprep.subr.mxu0 0.0
      %540 = vmatpush1.msra.mxu0 %v518
      %541 = vmatprep.subr.mxu0 0.0
      %542 = vmatpush1.msra.mxu0 %v519
      %543 = vmatprep.subr.mxu0 0.0
      %544 = vmatpush1.msra.mxu0 %v520
      %545 = vmatprep.subr.mxu0 0.0
      %546 = vmatpush1.msra.mxu0 %v521
      %547 = vmatprep.subr.mxu0 0.0
      %548 = vmatpush1.msra.mxu0 %v522
      %549 = vmatprep.subr.mxu0 0.0
      %550 = vmatpush1.msra.mxu0 %v523
      %551 = vmatprep.subr.mxu0 0.0
      %552 = vmatpush1.msra.mxu0 %v524
      %553 = vmatprep.subr.mxu0 0.0
      %554 = vmatpush1.msra.mxu0 %v525
      %555 = vmatprep.subr.mxu0 0.0
      %556 = vmatpush1.msra.mxu0 %v526
      %557 = vmatprep.subr.mxu0 0.0
      %558 = vmatpush1.msra.mxu0 %v527
      %559 = vmatprep.subr.mxu0 0.0
      %560 = vmatpush1.msra.mxu0 %v528
      %561 = vmatprep.subr.mxu0 0.0
      %562 = vmatpush1.msra.mxu0 0.0
      %563 = vmatprep.subr.mxu0 0.0
      %564 = vmatpush1.msra.mxu0 0.0
      %565 = vmatprep.subr.mxu0 0.0
      %566 = vmatpush1.msra.mxu0 0.0
      %567 = vmatprep.subr.mxu0 0.0
      %568 = vmatpush1.msra.mxu0 0.0
      %569 = vmatprep.subr.mxu0 0.0
      %570 = vmatpush1.msra.mxu0 0.0
      %571 = vmatprep.subr.mxu0 0.0
      %572 = vmatpush1.msra.mxu0 0.0
      %573 = vmatprep.subr.mxu0 0.0
      %574 = vmatpush1.msra.mxu0 0.0
      %575 = vmatprep.subr.mxu0 0.0
      %576 = vmatpush1.msra.mxu0 0.0
      %577 = vmatprep.subr.mxu0 0.0
      %578 = vmatpush1.msra.mxu0 0.0
      %579 = vmatprep.subr.mxu0 0.0
      %580 = vmatpush1.msra.mxu0 0.0
      %581 = vmatprep.subr.mxu0 0.0
      %582 = vmatpush1.msra.mxu0 0.0
      %583 = vmatprep.subr.mxu0 0.0
      %584 = vmatpush1.msra.mxu0 0.0
      %585 = vmatprep.subr.mxu0 0.0
      %586 = vmatpush1.msra.mxu0 0.0
      %587 = vmatprep.subr.mxu0 0.0
      %588 = vmatpush1.msra.mxu0 0.0
      %589 = vmatprep.subr.mxu0 0.0
      %590 = vmatpush1.msra.mxu0 0.0
      %591 = vmatprep.subr.mxu0 0.0
      %592 = vmatpush1.msra.mxu0 0.0
      %593 = vmatprep.mubr.f32.mxu0 0.0
      %594 = vmatmul.mubr.f32.gmra.mrb[0].mxu0 %v507
      %v595 = vpop.f32.mrb[0].mxu0
      %v596 = vadd.f32 0.0, %v595
      %v597 = vpop.f32.mrb[0].mxu0
      %598 = vdwg.mxu0
      %v599 = vmul.f32 %v596, %v512
      %v600 = vsub.f32 %v507, %v599
      %v601 = vsel %vm511, 1, 0
      %vm602 = vcmp.eq.s32.totalorder %v601, 1
      %v603 = vsel %vm602, %v600, 0.0
      %v604 = vmul.f32 %v603, 1.442695
      %v605 = vpow.pop %v604
      %606 = vmatprep.subr.mxu0 0.0
      %607 = vmatpush1.msra.mxu0 %v513
      %608 = vmatprep.subr.mxu0 0.0
      %609 = vmatpush1.msra.mxu0 %v514
      %610 = vmatprep.subr.mxu0 0.0
      %611 = vmatpush1.msra.mxu0 %v515
      %612 = vmatprep.subr.mxu0 0.0
      %613 = vmatpush1.msra.mxu0 %v516
      %614 = vmatprep.subr.mxu0 0.0
      %615 = vmatpush1.msra.mxu0 %v517
      %616 = vmatprep.subr.mxu0 0.0
      %617 = vmatpush1.msra.mxu0 %v518
      %618 = vmatprep.subr.mxu0 0.0
      %619 = vmatpush1.msra.mxu0 %v519
      %620 = vmatprep.subr.mxu0 0.0
      %621 = vmatpush1.msra.mxu0 %v520
      %622 = vmatprep.subr.mxu0 0.0
      %623 = vmatpush1.msra.mxu0 %v521
      %624 = vmatprep.subr.mxu0 0.0
      %625 = vmatpush1.msra.mxu0 %v522
      %626 = vmatprep.subr.mxu0 0.0
      %627 = vmatpush1.msra.mxu0 %v523
      %628 = vmatprep.subr.mxu0 0.0
      %629 = vmatpush1.msra.mxu0 %v524
      %630 = vmatprep.subr.mxu0 0.0
      %631 = vmatpush1.msra.mxu0 %v525
      %632 = vmatprep.subr.mxu0 0.0
      %633 = vmatpush1.msra.mxu0 %v526
      %634 = vmatprep.subr.mxu0 0.0
      %635 = vmatpush1.msra.mxu0 %v527
      %636 = vmatprep.subr.mxu0 0.0
      %637 = vmatpush1.msra.mxu0 %v528
      %638 = vmatprep.subr.mxu0 0.0
      %639 = vmatpush1.msra.mxu0 0.0
      %640 = vmatprep.subr.mxu0 0.0
      %641 = vmatpush1.msra.mxu0 0.0
      %642 = vmatprep.subr.mxu0 0.0
      %643 = vmatpush1.msra.mxu0 0.0
      %644 = vmatprep.subr.mxu0 0.0
      %645 = vmatpush1.msra.mxu0 0.0
      %646 = vmatprep.subr.mxu0 0.0
      %647 = vmatpush1.msra.mxu0 0.0
      %648 = vmatprep.subr.mxu0 0.0
      %649 = vmatpush1.msra.mxu0 0.0
      %650 = vmatprep.subr.mxu0 0.0
      %651 = vmatpush1.msra.mxu0 0.0
      %652 = vmatprep.subr.mxu0 0.0
      %653 = vmatpush1.msra.mxu0 0.0
      %654 = vmatprep.subr.mxu0 0.0
      %655 = vmatpush1.msra.mxu0 0.0
      %656 = vmatprep.subr.mxu0 0.0
      %657 = vmatpush1.msra.mxu0 0.0
      %658 = vmatprep.subr.mxu0 0.0
      %659 = vmatpush1.msra.mxu0 0.0
      %660 = vmatprep.subr.mxu0 0.0
      %661 = vmatpush1.msra.mxu0 0.0
      %662 = vmatprep.subr.mxu0 0.0
      %663 = vmatpush1.msra.mxu0 0.0
      %664 = vmatprep.subr.mxu0 0.0
      %665 = vmatpush1.msra.mxu0 0.0
      %666 = vmatprep.subr.mxu0 0.0
      %667 = vmatpush1.msra.mxu0 0.0
      %668 = vmatprep.subr.mxu0 0.0
      %669 = vmatpush1.msra.mxu0 0.0
      %670 = vmatprep.mubr.f32.mxu0 0.0
      %671 = vmatmul.mubr.f32.gmra.mrb[0].mxu0 %v605
      %v672 = vpop.f32.mrb[0].mxu0
      %v673 = vadd.f32 0.0, %v672
      %v674 = vpop.f32.mrb[0].mxu0
      %675 = vdwg.mxu0
      %v676 = vsel %vm602, %v673, 1.0
      %v677 = vrcp.pop %v676
      %v678 = vmul.f32 %v676, %v677
      %v679 = vsub.f32 2.0, %v678
      %v680 = vmul.f32 %v677, %v679
      %v681 = vmul.f32 %v605, %v680
      %v682 = vtanh.pop %v507
      %v683 = vmul.f32 %v682, 2.0
      %v684 = vsel %vm602, %v681, %v683
      %685 = vst [vmem:[%s195] sm:$0xff] %v684
      %p686 = scmp.lt.s32.totalorder %s15, 2
      %s687 = scalar_select %p686, %s15, 2
      %s688 = smul.addr %s687, 8
      %s689 = scalar_lea.vmem %s4, %s688
      // Predicated region
      $region37: #{forward.1} parent=35 // pred_check
        %p690 = pneg %p122
      $region38: #{forward.1} parent=35 // pred_check_branch
        %692 = sbr.rel (%p690) target = $region40
      $region39: #{forward.1} parent=35 // pred_region
        _
      $region40: #{forward.1} parent=35 // pred_fallthru
        _
    $region36: #{forward.1} parent=5 // pred_fallthru
      _
    %p693 = scmp.le.s32.totalorder 2, %s10
    // Predicated region
    $region41: #{forward.1} parent=5 // pred_check
      %p694 = pneg %p693
    $region42: #{forward.1} parent=5 // pred_check_branch
      %696 = sbr.rel (%p694) target = $region44
    $region43: #{forward.1} parent=5 // pred_region
      %s697 = ssub.s32 %s10, 2
      // Predicated region
      $region45: #{forward.1} parent=43 // pred_check
        %p698 = pneg %p128
      $region46: #{forward.1} parent=43 // pred_check_branch
        %700 = sbr.rel (%p698) target = $region48
      $region47: #{forward.1} parent=43 // pred_region
        %p701 = scmp.lt.s32.totalorder %s16, 2
        %s702 = scalar_select %p701, %s16, 2
        %s703 = smul.addr %s702, 8
        %s704 = scalar_lea.vmem %s4, %s703
      $region48: #{forward.1} parent=43 // pred_fallthru
        _
    $region44: #{forward.1} parent=5 // pred_fallthru
      _
  $region6: #{forward.1} parent=0 // loop_footer
    %s14 = sadd.s32 1, %s10
  $region7: #{forward.1} parent=0 // loop_footer_branch
    %9 = sbr.rel target = $region3
  $region8: #{forward.1} parent=0 // loop_exit
    _

</llo_original>
